<compile_context>
chip_gen: v5e
topology: v5e:2x2
jax: 0.10.0
libtpu: 0.0.40
codegen_flags: <defaults>
</compile_context>

<pallas_src>
import jax
import jax.numpy as jnp
from jax.experimental import pallas as pl
from jax.experimental.pallas import tpu as pltpu


LANE = 128          # large output channel dims padded to multiples of this (lane-dense vst)
ROW_QUANTUM = 8     # row tiles rounded to the f32 sublane quantum
MIN_GRID_STEPS = 4  # >=2 steps for v7x's two TensorCores, plus pipeline overlap


def _round_up(v, m):
    return ((v + m - 1) // m) * m


def _pad2d(a, rows, cols):
    r, c = a.shape
    return jnp.pad(a, ((0, rows - r), (0, cols - c)))


def _vmem_capacity_bytes():
    # Generation-aware: 128 MiB on v5e/v6e, 64 MiB per TensorCore on v7x.
    try:
        return int(pltpu.get_tpu_info().vmem_capacity_bytes)
    except Exception:
        return 64 * 1024 * 1024


def _pick_bm(n_rows, block_rows):
    # Row tile chosen jointly from N so there are always several grid steps.
    bm = min(block_rows, pl.cdiv(n_rows, MIN_GRID_STEPS))
    return max(ROW_QUANTUM, _round_up(bm, ROW_QUANTUM))


# ----------------------------- Pallas kernels ------------------------------------

def fused_mlp_kernel(x_ref, w1_ref, b1_ref, w2_ref, b2_ref, o_ref):
    # x streamed in f32; cast to bf16 right before the MXU matmul (f32 accumulation).
    x = x_ref[...].astype(jnp.bfloat16)
    h = jnp.dot(x, w1_ref[...], preferred_element_type=jnp.float32)
    h = jnp.maximum(h + b1_ref[...], 0.0)          # bias + ReLU in f32 on the VPU
    # Feed fc2 directly from vregs (bf16 truncation preserved) — no scratch roundtrip.
    y = jnp.dot(h.astype(jnp.bfloat16), w2_ref[...],
                preferred_element_type=jnp.float32)
    o_ref[...] = (y + b2_ref[...]).astype(o_ref.dtype)


def linear_kernel(x_ref, w_ref, b_ref, o_ref):
    x = x_ref[...].astype(jnp.bfloat16)
    y = jnp.dot(x, w_ref[...], preferred_element_type=jnp.float32)
    o_ref[...] = (y + b_ref[...]).astype(o_ref.dtype)


# ----------------------------- wrappers -------------------------------------------

def mlp_pallas(x, w1, b1, w2, b2, *, block_rows=512, out_dtype=jnp.bfloat16):
    """relu(x @ w1 + b1) @ w2 + b2 as one fused Pallas kernel.

    x: (N, C_in) f32; w1: (C_in, C_hid); b1: (C_hid,); w2: (C_hid, C_out); b2: (C_out,).
    Weights are pre-transposed relative to torch.nn.Linear's (out, in) storage.
    Output dtype defaults to bf16 (halves the dominant HBM writeback term); the hidden /
    output channel dims are padded to 128 so stores stay unmasked and lane-dense.
    """
    N, c_in = x.shape
    c_hid = w1.shape[1]
    c_out = w2.shape[1]

    chid_p = _round_up(c_hid, LANE)
    cout_p = _round_up(c_out, LANE)
    out_isz = jnp.dtype(out_dtype).itemsize

    bm = _pick_bm(N, block_rows)

    def vmem_bytes(bm_):
        return (2 * bm_ * c_in * 4                            # x tile (f32), double-buffered
                + 2 * bm_ * cout_p * out_isz                  # out tile, double-buffered
                + 2 * (c_in * chid_p + chid_p * cout_p) * 2   # resident W1/W2 (bf16, 2-buf)
                + 2 * 2 * (chid_p + cout_p) * 4               # biases (f32, 2-buf)
                + bm_ * chid_p * 6)                           # live fc1 intermediate (f32+bf16)

    budget = int(0.75 * _vmem_capacity_bytes())               # headroom for Mosaic scratch
    while vmem_bytes(bm) > budget and bm > ROW_QUANTUM:
        bm = max(ROW_QUANTUM, _round_up(bm // 2, ROW_QUANTUM))
    # TODO(synk): add a K/hidden reduction-tiled path (accumulator scratch + pl.when
    # init/finalize) for models whose padded weights alone exceed the VMEM budget.

    grid = (pl.cdiv(N, bm),)                                  # no row padding needed

    w1_p = _pad2d(w1, c_in, chid_p).astype(jnp.bfloat16)
    w2_p = _pad2d(w2, chid_p, cout_p).astype(jnp.bfloat16)
    b1_p = _pad2d(b1.reshape(1, -1), 1, chid_p).astype(jnp.float32)
    b2_p = _pad2d(b2.reshape(1, -1), 1, cout_p).astype(jnp.float32)

    flops = 2 * N * (c_in * chid_p + chid_p * cout_p)
    bytes_accessed = (N * c_in * 4 + c_in * chid_p * 2 + chid_p * cout_p * 2
                      + chid_p * 4 + cout_p * 4 + N * cout_p * out_isz)

    out = pl.pallas_call(
        fused_mlp_kernel,
        out_shape=jax.ShapeDtypeStruct((N, cout_p), out_dtype),
        grid_spec=pltpu.PrefetchScalarGridSpec(
            num_scalar_prefetch=0,
            grid=grid,
            in_specs=[
                pl.BlockSpec((bm, c_in), lambda i: (i, 0)),        # x row tile (f32, full K)
                pl.BlockSpec((c_in, chid_p), lambda i: (0, 0)),    # W1 (resident)
                pl.BlockSpec((1, chid_p), lambda i: (0, 0)),       # b1
                pl.BlockSpec((chid_p, cout_p), lambda i: (0, 0)),  # W2 (resident)
                pl.BlockSpec((1, cout_p), lambda i: (0, 0)),       # b2
            ],
            out_specs=pl.BlockSpec((bm, cout_p), lambda i: (i, 0)),
        ),
        compiler_params=pltpu.CompilerParams(
            dimension_semantics=("parallel",),   # row tiles shard across v7x's 2 TCs
            vmem_limit_bytes=int(min(budget, max(32 * 1024 * 1024, 2 * vmem_bytes(bm)))),
        ),
        cost_estimate=pl.CostEstimate(flops=flops, transcendentals=0,
                                      bytes_accessed=bytes_accessed),
    )(x.astype(jnp.float32), w1_p, b1_p, w2_p, b2_p)

    return out[:, :c_out]


def linear_pallas(x, w, b, *, block_rows=512):
    """x @ w + b as a Pallas kernel. No channel padding (c_in / c_out kept at full dims),
    f32 x streamed and cast in-kernel. Intended for row counts large enough that a kernel
    launch pays off; tiny inputs should use plain XLA (see grand_forward)."""
    N, c_in = x.shape
    c_out = w.shape[1]
    bm = _pick_bm(N, block_rows)
    grid = (pl.cdiv(N, bm),)

    w_b = w.astype(jnp.bfloat16)
    b_b = b.reshape(1, -1).astype(jnp.float32)

    out = pl.pallas_call(
        linear_kernel,
        out_shape=jax.ShapeDtypeStruct((N, c_out), jnp.float32),
        grid_spec=pltpu.PrefetchScalarGridSpec(
            num_scalar_prefetch=0,
            grid=grid,
            in_specs=[
                pl.BlockSpec((bm, c_in), lambda i: (i, 0)),
                pl.BlockSpec((c_in, c_out), lambda i: (0, 0)),
                pl.BlockSpec((1, c_out), lambda i: (0, 0)),
            ],
            out_specs=pl.BlockSpec((bm, c_out), lambda i: (i, 0)),
        ),
        compiler_params=pltpu.CompilerParams(
            dimension_semantics=("parallel",),
            vmem_limit_bytes=32 * 1024 * 1024,
        ),
        cost_estimate=pl.CostEstimate(
            flops=2 * N * c_in * c_out, transcendentals=0,
            bytes_accessed=N * c_in * 4 + c_in * c_out * 2 + c_out * 4 + N * c_out * 4),
    )(x.astype(jnp.float32), w_b, b_b)
    return out


# ----------------------------- GRAND forward (eval) --------------------------------

def grand_forward(x, edge_index, batch, num_graphs, params, *, K=3):
    """Inference-mode GRAND forward. Dropout / drop_node are identity at inference."""
    N = x.shape[0]
    row, col = edge_index[0], edge_index[1]
    # add self loops
    loops = jnp.arange(N, dtype=row.dtype)
    row = jnp.concatenate([row, loops])
    col = jnp.concatenate([col, loops])
    deg = jnp.maximum(jnp.zeros((N,), jnp.float32).at[row].add(1.0), 1.0)
    norm = (1.0 / deg)[row]
    # TODO(synk): the edge-indexed scatter-add propagation and global_mean_pool below are
    # data-dependent scatters with no clean Pallas TPU equivalent; kept in plain JAX.
    for _ in range(K):
        x = jnp.zeros_like(x).at[row].add(x[col] * norm[:, None])

    # MLP(in -> hidden -> hidden), fused Pallas kernel; bf16 output, pooled in f32.
    h = mlp_pallas(x, params["w1"], params["b1"], params["w2"], params["b2"])

    # global_mean_pool over `batch`, accumulated in f32
    sums = jnp.zeros((num_graphs, h.shape[1]), jnp.float32).at[batch].add(
        h.astype(jnp.float32))
    counts = jnp.zeros((num_graphs,), jnp.float32).at[batch].add(1.0)
    pooled = sums / jnp.maximum(counts, 1.0)[:, None]

    # classifier Linear(hidden -> out). At GRAND scales num_graphs is tiny, so the
    # pad->pallas_call->slice sequence is pure overhead (per perf review); use plain XLA
    # unless there are enough pooled rows to make a kernel launch worthwhile.
    if pooled.shape[0] >= 256:
        return linear_pallas(pooled, params["wc"], params["bc"])
    return pooled @ params["wc"] + params["bc"]


# ----------------------------- demo / self-check -----------------------------------

if __name__ == "__main__":
    # Small GRAND-consistent shapes: 12 nodes in 2 graphs, 32 input features,
    # 64 hidden channels, 8 classes, K=3 propagation steps.
    num_nodes, in_channels, hidden_channels, out_channels, K = 12, 32, 64, 8, 3
    num_graphs = 2

    key = jax.random.PRNGKey(0)
    kx, kw1, kb1, kw2, kb2, kwc, kbc, klin = jax.random.split(key, 8)

    x = jax.random.normal(kx, (num_nodes, in_channels), dtype=jnp.float32)

    # Two 6-node ring graphs (both edge directions).
    def ring(offset, n):
        src = jnp.arange(n, dtype=jnp.int32) + offset
        dst = (jnp.arange(n, dtype=jnp.int32) + 1) % n + offset
        return jnp.stack([jnp.concatenate([src, dst]), jnp.concatenate([dst, src])])

    edge_index = jnp.concatenate([ring(0, 6), ring(6, 6)], axis=1).astype(jnp.int32)
    batch = jnp.concatenate([jnp.zeros(6, jnp.int32), jnp.ones(6, jnp.int32)])

    # Weights stored pre-transposed ((in, out)) relative to torch's (out, in).
    params = dict(
        w1=jax.random.normal(kw1, (in_channels, hidden_channels), jnp.float32) * 0.1,
        b1=jax.random.normal(kb1, (hidden_channels,), jnp.float32) * 0.1,
        w2=jax.random.normal(kw2, (hidden_channels, hidden_channels), jnp.float32) * 0.1,
        b2=jax.random.normal(kb2, (hidden_channels,), jnp.float32) * 0.1,
        wc=jax.random.normal(kwc, (hidden_channels, out_channels), jnp.float32) * 0.1,
        bc=jax.random.normal(kbc, (out_channels,), jnp.float32) * 0.1,
    )

    out = grand_forward(x, edge_index, batch, num_graphs, params, K=K)
    out = jax.block_until_ready(out)
    assert out.shape == (num_graphs, out_channels)

    # Pure-JAX f32 reference; kernels use bf16 MXU operands / bf16 MLP output with f32
    # accumulation, so compare with a tolerance that covers bf16 rounding.
    def ref_forward():
        xr = x
        row, col = edge_index[0], edge_index[1]
        loops = jnp.arange(num_nodes, dtype=row.dtype)
        row = jnp.concatenate([row, loops])
        col = jnp.concatenate([col, loops])
        deg = jnp.maximum(jnp.zeros((num_nodes,)).at[row].add(1.0), 1.0)
        norm = (1.0 / deg)[row]
        for _ in range(K):
            xr = jnp.zeros_like(xr).at[row].add(xr[col] * norm[:, None])
        h = jnp.maximum(xr @ params["w1"] + params["b1"], 0.0) @ params["w2"] + params["b2"]
        sums = jnp.zeros((num_graphs, h.shape[1])).at[batch].add(h)
        cnt = jnp.zeros((num_graphs,)).at[batch].add(1.0)
        pooled = sums / cnt[:, None]
        return pooled @ params["wc"] + params["bc"]

    ref = ref_forward()
    assert jnp.allclose(out, ref, atol=3e-2, rtol=3e-2), "mismatch vs reference"

    # Standalone check of the Pallas classifier head at a row count where it is used.
    xl = jax.random.normal(klin, (256, hidden_channels), dtype=jnp.float32)
    lp = jax.block_until_ready(linear_pallas(xl, params["wc"], params["bc"]))
    lref = xl @ params["wc"] + params["bc"]
    assert jnp.allclose(lp, lref, atol=3e-2, rtol=3e-2), "linear head mismatch"

    print("KERNEL_OK")
</pallas_src>

<mosaic_0001>
module attributes {stable_mosaic.version = 11 : i64} {
  func.func @fused_mlp_kernel(%arg0: i32, %arg1: memref<8x32xf32, #tpu.memory_space<vmem>>, %arg2: memref<32x128xbf16, #tpu.memory_space<vmem>>, %arg3: memref<1x128xf32, #tpu.memory_space<vmem>>, %arg4: memref<128x128xbf16, #tpu.memory_space<vmem>>, %arg5: memref<1x128xf32, #tpu.memory_space<vmem>>, %arg6: memref<8x128xbf16, #tpu.memory_space<vmem>>) attributes {dimension_semantics = [#tpu.dimension_semantics<parallel>], iteration_bounds = array<i64: 2>, scalar_prefetch = 0 : i64, scratch_operands = 0 : i64, tpu.core_type = #tpu.core_type<tc>, window_params = [{transform_indices = @transform_0, window_bounds = array<i64: 8, 32>}, {pipeline_mode = #tpu.pipeline_mode<synchronous>, transform_indices = @transform_1, window_bounds = array<i64: 32, 128>}, {pipeline_mode = #tpu.pipeline_mode<synchronous>, transform_indices = @transform_2, window_bounds = array<i64: 1, 128>}, {pipeline_mode = #tpu.pipeline_mode<synchronous>, transform_indices = @transform_3, window_bounds = array<i64: 128, 128>}, {pipeline_mode = #tpu.pipeline_mode<synchronous>, transform_indices = @transform_4, window_bounds = array<i64: 1, 128>}, {transform_indices = @transform_5, window_bounds = array<i64: 8, 128>}]} {
    %c0 = arith.constant 0 : index
    %c0_0 = arith.constant 0 : index
    %0 = vector.load %arg1[%c0, %c0_0] : memref<8x32xf32, #tpu.memory_space<vmem>>, vector<8x32xf32>
    %1 = arith.truncf %0 : vector<8x32xf32> to vector<8x32xbf16>
    %c0_1 = arith.constant 0 : index
    %c0_2 = arith.constant 0 : index
    %2 = vector.load %arg2[%c0_1, %c0_2] : memref<32x128xbf16, #tpu.memory_space<vmem>>, vector<32x128xbf16>
    %cst = arith.constant dense<0.000000e+00> : vector<8x128xf32>
    %3 = tpu.matmul %1, %2, %cst {dimension_numbers = #tpu.dot_dimension_numbers<[1], [0], [0], [1], [0, 0, 1, 1], [], []>} : vector<8x32xbf16>, vector<32x128xbf16>, vector<8x128xf32> -> vector<8x128xf32>
    %c0_3 = arith.constant 0 : index
    %c0_4 = arith.constant 0 : index
    %4 = vector.load %arg3[%c0_3, %c0_4] : memref<1x128xf32, #tpu.memory_space<vmem>>, vector<1x128xf32>
    %5 = vector.broadcast %4 : vector<1x128xf32> to vector<8x128xf32>
    %6 = arith.addf %3, %5 : vector<8x128xf32>
    %cst_5 = arith.constant 0.000000e+00 : f32
    %7 = vector.broadcast %cst_5 : f32 to vector<8x128xf32>
    %8 = arith.maximumf %6, %7 : vector<8x128xf32>
    %9 = arith.truncf %8 : vector<8x128xf32> to vector<8x128xbf16>
    %c0_6 = arith.constant 0 : index
    %c0_7 = arith.constant 0 : index
    %10 = vector.load %arg4[%c0_6, %c0_7] : memref<128x128xbf16, #tpu.memory_space<vmem>>, vector<128x128xbf16>
    %cst_8 = arith.constant dense<0.000000e+00> : vector<8x128xf32>
    %11 = tpu.matmul %9, %10, %cst_8 {dimension_numbers = #tpu.dot_dimension_numbers<[1], [0], [0], [1], [0, 0, 1, 1], [], []>} : vector<8x128xbf16>, vector<128x128xbf16>, vector<8x128xf32> -> vector<8x128xf32>
    %c0_9 = arith.constant 0 : index
    %c0_10 = arith.constant 0 : index
    %12 = vector.load %arg5[%c0_9, %c0_10] : memref<1x128xf32, #tpu.memory_space<vmem>>, vector<1x128xf32>
    %13 = vector.broadcast %12 : vector<1x128xf32> to vector<8x128xf32>
    %14 = arith.addf %11, %13 : vector<8x128xf32>
    %15 = arith.truncf %14 : vector<8x128xf32> to vector<8x128xbf16>
    %c0_11 = arith.constant 0 : index
    %c0_12 = arith.constant 0 : index
    %16 = vector.load %arg6[%c0_11, %c0_12] : memref<8x128xbf16, #tpu.memory_space<vmem>>, vector<8x128xbf16>
    tpu.vector_store %arg6[%c0_11, %c0_12], %15 {strides = array<i32>} : memref<8x128xbf16, #tpu.memory_space<vmem>>, vector<8x128xbf16>,
    return
  }
  func.func @transform_0(%arg0: i32) -> (i32, i32) {
    %c0_i32 = arith.constant 0 : i32
    %c0_i32_0 = arith.constant 0 : i32
    return %arg0, %c0_i32 : i32, i32
  }
  func.func @transform_1(%arg0: i32) -> (i32, i32) {
    %c0_i32 = arith.constant 0 : i32
    %c0_i32_0 = arith.constant 0 : i32
    %c0_i32_1 = arith.constant 0 : i32
    return %c0_i32, %c0_i32_0 : i32, i32
  }
  func.func @transform_2(%arg0: i32) -> (i32, i32) {
    %c0_i32 = arith.constant 0 : i32
    %c0_i32_0 = arith.constant 0 : i32
    %c0_i32_1 = arith.constant 0 : i32
    return %c0_i32, %c0_i32_0 : i32, i32
  }
  func.func @transform_3(%arg0: i32) -> (i32, i32) {
    %c0_i32 = arith.constant 0 : i32
    %c0_i32_0 = arith.constant 0 : i32
    %c0_i32_1 = arith.constant 0 : i32
    return %c0_i32, %c0_i32_0 : i32, i32
  }
  func.func @transform_4(%arg0: i32) -> (i32, i32) {
    %c0_i32 = arith.constant 0 : i32
    %c0_i32_0 = arith.constant 0 : i32
    %c0_i32_1 = arith.constant 0 : i32
    return %c0_i32, %c0_i32_0 : i32, i32
  }
  func.func @transform_5(%arg0: i32) -> (i32, i32) {
    %c0_i32 = arith.constant 0 : i32
    %c0_i32_0 = arith.constant 0 : i32
    return %arg0, %c0_i32 : i32, i32
  }
}

</mosaic_0001>

<llo_original>
// kernel: tpu_custom_call.1
$region0: #{tpu_custom_call.1}
  #allocation0 [shape = 'u32[]', space=smem, size = 0x4, offset = 0x4, fixed_abs, tag = 'smem constant byte address 0x4 - core index']
  #allocation1 [shape = 'u32[72,128]{1,0:T(1,128)}', space=vmem, size = 0x9000, scoped, tag = 'internal scratch']
  %s0 = inlined_call_operand.hbm [shape: f32[12,32], index: 0, kind: input, shape index: {}]
  %s1 = inlined_call_operand.hbm [shape: bf16[32,128], index: 1, kind: input, shape index: {}]
  %s2 = inlined_call_operand.vmem [shape: f32[1,128], index: 2, kind: input, shape index: {}]
  %s3 = inlined_call_operand.hbm [shape: bf16[128,128], index: 3, kind: input, shape index: {}]
  %s4 = inlined_call_operand.vmem [shape: f32[1,128], index: 4, kind: input, shape index: {}]
  %s5 = inlined_call_operand.hbm [shape: bf16[12,128], index: 5, kind: output, shape index: {}]
  %s6 = sld [smem:[#allocation0]]
  $region65: #{tpu_custom_call.1} parent=0
    _
  %s8 = ssub.s32 1, %s6
  %s9 = scalar_select 0, %s8, %s6
  $region1: #{tpu_custom_call.1} parent=0
    #allocation2 [shape = 'u8[8192]{0}', space=vmem, size = 0x2000, scoped, tag = 'input window, operand 0']
    #allocation3 [shape = 's32[2]{0}', space=sflag, size = 0x8, scoped, tag = 'scoped memory for tpu_custom_call.1']
    #allocation4 [shape = 's32[2]{0}', space=sflag, size = 0x8, scoped, tag = 'scoped memory for tpu_custom_call.1']
    #allocation5 [shape = 'u8[8192]{0}', space=vmem, size = 0x2000, scoped, tag = 'input window, operand 1, single buffered']
    #allocation6 [shape = 's32[1]{0}', space=sflag, size = 0x4, scoped, tag = 'scoped memory for tpu_custom_call.1']
    #allocation7 [shape = 'u8[32768]{0}', space=vmem, size = 0x8000, scoped, tag = 'input window, operand 3, single buffered']
    #allocation8 [shape = 'u8[4096]{0}', space=vmem, size = 0x1000, scoped, tag = 'output window, operand 0']
    %10 = vsyncpa [#allocation3], 0
    %s11 = scalar_lea.sflag [#allocation3], 1
    %12 = vsyncpa %s11, 0
    %13 = vsyncpa [#allocation6], 0
    %14 = vsyncpa [#allocation4], 0
    %s15 = scalar_lea.sflag [#allocation4], 1
    %16 = vsyncpa %s15, 0
    loop: start=0, step=1, limit=4
    $region2: #{tpu_custom_call.1} parent=1 // loop_pre_header
      _
    $region3: #{tpu_custom_call.1} parent=1 // loop_header
      %s18 = sphi 0, %s22
      %p19 = scmp.ge.s32.totalorder %s18, 4
      %s28 = sphi 0, %s30
      %s31 = sphi 0, %s28
      %s32 = sphi 0, %s31
      %s48 = sphi 0, %s32
      %s52 = sphi 0, %s52
      %s54 = sphi 0, %s52
      %s55 = sphi 0, %s54
      %s69 = sphi 0, %s55
      %s73 = sphi 0, %s73
      %s75 = sphi 0, %s73
      %s76 = sphi 0, %s75
      %s90 = sphi 0, %s76
      %s94 = sphi 0, %s94
      %s96 = sphi 0, %s94
      %s97 = sphi 0, %s96
      %s111 = sphi 0, %s97
      %s115 = sphi 0, %s115
      %s117 = sphi 0, %s115
      %s118 = sphi 0, %s117
      %s132 = sphi 0, %s118
      %s138 = sphi 0, %s140
      %s141 = sphi 0, %s138
      %s142 = sphi 0, %s141
      %s158 = sphi 0, %s142
    $region4: #{tpu_custom_call.1} parent=1 // loop_header_branch
      %21 = sbr.rel (%p19) target = $region8
    $region5: #{tpu_custom_call.1} parent=1 // loop_body
      %s23 = ssub.s32 %s18, 1
      %s24 = ssub.s32 %s18, 2
      %s25 = sadd.s32 %s18, 1
      %s26 = ssub.s32 %s18, %s25
      %p27 = scmp.eq.s32.totalorder %s26, 0
      %s29 = sadd.s32 %s28, 1
      %s30 = scalar_select %p27, %s28, %s29
      %p33 = pneg %p27
      %p34 = scmp.eq.s32.totalorder %s18, 1
      %p35 = por %p33, %p34
      %p36 = scmp.ne.s32.totalorder %s28, %s31
      %p37 = scmp.eq.s32.totalorder %s18, 0
      %p38 = por %p36, %p37
      %p39 = scmp.ne.s32.totalorder %s28, %s31
      %p40 = scmp.eq.s32.totalorder %s23, 1
      %p41 = por %p39, %p40
      %p42 = scmp.ne.s32.totalorder %s31, %s32
      %p43 = scmp.eq.s32.totalorder %s23, 0
      %p44 = por %p42, %p43
      %p45 = scmp.ne.s32.totalorder %s31, %s32
      %p46 = scmp.eq.s32.totalorder %s24, 1
      %p47 = por %p45, %p46
      %p49 = scmp.ne.s32.totalorder %s32, %s48
      %p50 = scmp.eq.s32.totalorder %s24, 0
      %p51 = por %p49, %p50
      %s53 = sadd.s32 %s52, 1
      %p56 = scmp.eq.s32.totalorder %s18, 1
      %p57 = scmp.ne.s32.totalorder %s52, %s54
      %p58 = scmp.eq.s32.totalorder %s18, 0
      %p59 = por %p57, %p58
      %p60 = scmp.ne.s32.totalorder %s52, %s54
      %p61 = scmp.eq.s32.totalorder %s23, 1
      %p62 = por %p60, %p61
      %p63 = scmp.ne.s32.totalorder %s54, %s55
      %p64 = scmp.eq.s32.totalorder %s23, 0
      %p65 = por %p63, %p64
      %p66 = scmp.ne.s32.totalorder %s54, %s55
      %p67 = scmp.eq.s32.totalorder %s24, 1
      %p68 = por %p66, %p67
      %p70 = scmp.ne.s32.totalorder %s55, %s69
      %p71 = scmp.eq.s32.totalorder %s24, 0
      %p72 = por %p70, %p71
      %s74 = sadd.s32 %s73, 1
      %p77 = scmp.eq.s32.totalorder %s18, 1
      %p78 = scmp.ne.s32.totalorder %s73, %s75
      %p79 = scmp.eq.s32.totalorder %s18, 0
      %p80 = por %p78, %p79
      %p81 = scmp.ne.s32.totalorder %s73, %s75
      %p82 = scmp.eq.s32.totalorder %s23, 1
      %p83 = por %p81, %p82
      %p84 = scmp.ne.s32.totalorder %s75, %s76
      %p85 = scmp.eq.s32.totalorder %s23, 0
      %p86 = por %p84, %p85
      %p87 = scmp.ne.s32.totalorder %s75, %s76
      %p88 = scmp.eq.s32.totalorder %s24, 1
      %p89 = por %p87, %p88
      %p91 = scmp.ne.s32.totalorder %s76, %s90
      %p92 = scmp.eq.s32.totalorder %s24, 0
      %p93 = por %p91, %p92
      %s95 = sadd.s32 %s94, 1
      %p98 = scmp.eq.s32.totalorder %s18, 1
      %p99 = scmp.ne.s32.totalorder %s94, %s96
      %p100 = scmp.eq.s32.totalorder %s18, 0
      %p101 = por %p99, %p100
      %p102 = scmp.ne.s32.totalorder %s94, %s96
      %p103 = scmp.eq.s32.totalorder %s23, 1
      %p104 = por %p102, %p103
      %p105 = scmp.ne.s32.totalorder %s96, %s97
      %p106 = scmp.eq.s32.totalorder %s23, 0
      %p107 = por %p105, %p106
      %p108 = scmp.ne.s32.totalorder %s96, %s97
      %p109 = scmp.eq.s32.totalorder %s24, 1
      %p110 = por %p108, %p109
      %p112 = scmp.ne.s32.totalorder %s97, %s111
      %p113 = scmp.eq.s32.totalorder %s24, 0
      %p114 = por %p112, %p113
      %s116 = sadd.s32 %s115, 1
      %p119 = scmp.eq.s32.totalorder %s18, 1
      %p120 = scmp.ne.s32.totalorder %s115, %s117
      %p121 = scmp.eq.s32.totalorder %s18, 0
      %p122 = por %p120, %p121
      %p123 = scmp.ne.s32.totalorder %s115, %s117
      %p124 = scmp.eq.s32.totalorder %s23, 1
      %p125 = por %p123, %p124
      %p126 = scmp.ne.s32.totalorder %s117, %s118
      %p127 = scmp.eq.s32.totalorder %s23, 0
      %p128 = por %p126, %p127
      %p129 = scmp.ne.s32.totalorder %s117, %s118
      %p130 = scmp.eq.s32.totalorder %s24, 1
      %p131 = por %p129, %p130
      %p133 = scmp.ne.s32.totalorder %s118, %s132
      %p134 = scmp.eq.s32.totalorder %s24, 0
      %p135 = por %p133, %p134
      %s136 = ssub.s32 %s18, %s25
      %p137 = scmp.eq.s32.totalorder %s136, 0
      %s139 = sadd.s32 %s138, 1
      %s140 = scalar_select %p137, %s138, %s139
      %p143 = pneg %p137
      %p144 = scmp.eq.s32.totalorder %s18, 1
      %p145 = por %p143, %p144
      %p146 = scmp.ne.s32.totalorder %s138, %s141
      %p147 = scmp.eq.s32.totalorder %s18, 0
      %p148 = por %p146, %p147
      %p149 = scmp.ne.s32.totalorder %s138, %s141
      %p150 = scmp.eq.s32.totalorder %s23, 1
      %p151 = por %p149, %p150
      %p152 = scmp.ne.s32.totalorder %s141, %s142
      %p153 = scmp.eq.s32.totalorder %s23, 0
      %p154 = por %p152, %p153
      %p155 = scmp.ne.s32.totalorder %s141, %s142
      %p156 = scmp.eq.s32.totalorder %s24, 1
      %p157 = por %p155, %p156
      %p159 = scmp.ne.s32.totalorder %s142, %s158
      %p160 = scmp.eq.s32.totalorder %s24, 0
      %p161 = por %p159, %p160
      %p162 = scmp.le.s32.totalorder 1, %s18
      %p163 = scmp.lt.s32.totalorder %s18, 3
      %p164 = pnand %p162, %p163
      %p165 = pneg %p164
      // Predicated region
      $region9: #{tpu_custom_call.1} parent=5 // pred_check
        _
      $region10: #{tpu_custom_call.1} parent=5 // pred_check_branch
        %167 = sbr.rel (%p164) target = $region12
      $region11: #{tpu_custom_call.1} parent=5 // pred_region
        %s168 = ssub.s32 %s18, 1
        // Predicated region
        $region13: #{tpu_custom_call.1} parent=11 // pred_check
          %p169 = pneg %p65
        $region14: #{tpu_custom_call.1} parent=11 // pred_check_branch
          %171 = sbr.rel (%p169) target = $region16
        $region15: #{tpu_custom_call.1} parent=11 // pred_region
          %173 = vsyncadd [#allocation6], 0
          %s174 = sshll.u32 %s1, 4
          %s175 = int_to_ptr.hbm [resolvable:$true] %s174
          %s176 = sshll.u32 [#allocation5], 4
          %s177 = int_to_ptr.vmem [resolvable:$true] %s176
          %182 = dma.hbm_to_vmem [thread:$0]  %s175, 256, %s177, [#allocation6], 64, 64, 4
        $region16: #{tpu_custom_call.1} parent=11 // pred_fallthru
          _
        // Predicated region
        $region17: #{tpu_custom_call.1} parent=11 // pred_check
          %p183 = pneg %p86
        $region18: #{tpu_custom_call.1} parent=11 // pred_check_branch
          %185 = sbr.rel (%p183) target = $region20
        $region19: #{tpu_custom_call.1} parent=11 // pred_region
          _
        $region20: #{tpu_custom_call.1} parent=11 // pred_fallthru
          _
        // Predicated region
        $region21: #{tpu_custom_call.1} parent=11 // pred_check
          %p186 = pneg %p107
        $region22: #{tpu_custom_call.1} parent=11 // pred_check_branch
          %188 = sbr.rel (%p186) target = $region24
        $region23: #{tpu_custom_call.1} parent=11 // pred_region
          %190 = vsyncadd [#allocation6], 0
          %s191 = sshll.u32 %s3, 4
          %s192 = int_to_ptr.hbm [resolvable:$true] %s191
          %s193 = sshll.u32 [#allocation7], 4
          %s194 = int_to_ptr.vmem [resolvable:$true] %s193
          %199 = dma.hbm_to_vmem [thread:$0]  %s192, 1024, %s194, [#allocation6], 64, 64, 4
        $region24: #{tpu_custom_call.1} parent=11 // pred_fallthru
          _
        // Predicated region
        $region25: #{tpu_custom_call.1} parent=11 // pred_check
          %p200 = pneg %p128
        $region26: #{tpu_custom_call.1} parent=11 // pred_check_branch
          %202 = sbr.rel (%p200) target = $region28
        $region27: #{tpu_custom_call.1} parent=11 // pred_region
          _
        $region28: #{tpu_custom_call.1} parent=11 // pred_fallthru
          _
      $region12: #{tpu_custom_call.1} parent=5 // pred_fallthru
        _
      %p203 = scmp.lt.s32.totalorder %s18, 2
      // Predicated region
      $region29: #{tpu_custom_call.1} parent=5 // pred_check
        %p204 = pneg %p203
      $region30: #{tpu_custom_call.1} parent=5 // pred_check_branch
        %206 = sbr.rel (%p204) target = $region32
      $region31: #{tpu_custom_call.1} parent=5 // pred_region
        // Predicated region
        $region33: #{tpu_custom_call.1} parent=31 // pred_check
          %p207 = pneg %p38
        $region34: #{tpu_custom_call.1} parent=31 // pred_check_branch
          %209 = sbr.rel (%p207) target = $region36
        $region35: #{tpu_custom_call.1} parent=31 // pred_region
          %s210 = sand.u32 %s28, 1
          %s211 = scalar_lea.sflag [#allocation3], %s210
          %s212 = sand.u32 %s28, 1
          %s213 = smul.addr %s212, 8
          %s214 = scalar_lea.vmem [#allocation2], %s213
          %216 = vsyncadd %s211, 0
          %s217 = smul.addr %s18, 8
          %s218 = scalar_lea.hbm %s0, %s217
          %s220 = sshll.u32 %s218, 4
          %s221 = int_to_ptr.hbm [resolvable:$true] %s220
          %s222 = sshll.u32 %s214, 4
          %s223 = int_to_ptr.vmem [resolvable:$true] %s222
          %225 = dma.hbm_to_vmem [thread:$0]  %s221, 128, %s223, %s211
        $region36: #{tpu_custom_call.1} parent=31 // pred_fallthru
          _
      $region32: #{tpu_custom_call.1} parent=5 // pred_fallthru
        _
      %p226 = scmp.le.s32.totalorder 1, %s18
      %p227 = scmp.lt.s32.totalorder %s18, 3
      %p228 = pnand %p226, %p227
      %p229 = pneg %p228
      // Predicated region
      $region37: #{tpu_custom_call.1} parent=5 // pred_check
        _
      $region38: #{tpu_custom_call.1} parent=5 // pred_check_branch
        %231 = sbr.rel (%p228) target = $region40
      $region39: #{tpu_custom_call.1} parent=5 // pred_region
        %s232 = ssub.s32 %s18, 1
        %s233 = sand.u32 %s31, 1
        %s234 = scalar_lea.sflag [#allocation3], %s233
        %s235 = sand.u32 %s31, 1
        %s236 = smul.addr %s235, 8
        %s237 = scalar_lea.vmem [#allocation2], %s236
        // Predicated region
        $region41: #{tpu_custom_call.1} parent=39 // pred_check
          %p238 = pneg %p44
        $region42: #{tpu_custom_call.1} parent=39 // pred_check_branch
          %240 = sbr.rel (%p238) target = $region44
        $region43: #{tpu_custom_call.1} parent=39 // pred_region
          %242 = dma.done %s234, 128
        $region44: #{tpu_custom_call.1} parent=39 // pred_fallthru
          _
        // Predicated region
        $region45: #{tpu_custom_call.1} parent=39 // pred_check
          %p243 = pneg %p65
        $region46: #{tpu_custom_call.1} parent=39 // pred_check_branch
          %245 = sbr.rel (%p243) target = $region48
        $region47: #{tpu_custom_call.1} parent=39 // pred_region
          %247 = dma.done [#allocation6], 256
        $region48: #{tpu_custom_call.1} parent=39 // pred_fallthru
          _
        // Predicated region
        $region49: #{tpu_custom_call.1} parent=39 // pred_check
          %p248 = pneg %p107
        $region50: #{tpu_custom_call.1} parent=39 // pred_check_branch
          %250 = sbr.rel (%p248) target = $region52
        $region51: #{tpu_custom_call.1} parent=39 // pred_region
          %252 = dma.done [#allocation6], 1024
        $region52: #{tpu_custom_call.1} parent=39 // pred_fallthru
          _
        %s253 = sand.u32 %s31, 1
        %s254 = scalar_lea.sflag [#allocation3], %s253
        %s255 = sand.u32 %s31, 1
        %s256 = smul.addr %s255, 8
        %s257 = scalar_lea.vmem [#allocation2], %s256
        %p258 = pneg %p44
        %p259 = pneg %p41
        %p260 = pneg %p65
        %p261 = pneg %p62
        %p262 = pneg %p86
        %p263 = pneg %p83
        %p264 = pneg %p107
        %p265 = pneg %p104
        %p266 = pneg %p128
        %p267 = pneg %p125
        %p268 = pneg %p154
        %p269 = pneg %p151
        %s270 = sand.u32 %s141, 1
        %s271 = scalar_lea.sflag [#allocation4], %s270
        %s272 = sand.u32 %s141, 1
        %s273 = smul.addr %s272, 4
        %s274 = scalar_lea.vmem [#allocation8], %s273
        %v276 = vld [vmem:[%s237] sm:$0xff]
        %v277 = vpack.c.bf16 %v276, %v276
        %v278 = vld [vmem:[#allocation5] sm:$0xf]
        %v279 = vld [vmem:[#allocation5 + $0x4] sm:$0xf]
        %v280 = vld [vmem:[#allocation5 + $0x8] sm:$0xf]
        %v281 = vld [vmem:[#allocation5 + $0xc] sm:$0xf]
        %v282 = vld [vmem:[%s2] sm:$0x1]
        %v284 = vperm.slane %v282, 0
        %v290 = vunpack.c.l.b16 %v278
        %v291 = vunpack.c.l.b16 %v279
        %v292 = vunpack.c.l.b16 %v280
        %v293 = vunpack.c.l.b16 %v281
        %v294 = vpack.c.b16 %v291, %v290
        %v295 = vpack.c.b16 %v293, %v292
        %vm298 = vcmask 261120
        %v300 = vsel %vm298, %v277, 0
        %302 = vmatpush.bf16.msra.mxu0 0
        %303 = vmatpush.bf16.msra.mxu0 0
        %304 = vmatpush.bf16.msra.mxu0 0
        %305 = vmatpush.bf16.msra.mxu0 0
        %306 = vmatpush.bf16.msra.mxu0 0
        %307 = vmatpush.bf16.msra.mxu0 0
        %308 = vmatpush.bf16.msra.mxu0 %v295
        %309 = vmatpush.bf16.msra.mxu0 %v294
        %310 = vmatmul.bf16.gmra.mxu0 %v300
        %v311 = vpop.f32.mrf.mxu0
        %v312 = vadd.f32 %v284, %v311
        %v313 = vpop.f32.mrf.mxu0
        %314 = vdwg.mxu0
        %v315 = vmax.f32 %v312, 0.0
        %v316 = vpack.c.bf16 %v315, %v315
        %v317 = vld [vmem:[#allocation7] sm:$0xf]
        %v318 = vld [vmem:[#allocation7 + $0x4] sm:$0xf]
        %v319 = vld [vmem:[#allocation7 + $0x8] sm:$0xf]
        %v320 = vld [vmem:[#allocation7 + $0xc] sm:$0xf]
        %v321 = vld [vmem:[#allocation7 + $0x10] sm:$0xf]
        %v322 = vld [vmem:[#allocation7 + $0x14] sm:$0xf]
        %v323 = vld [vmem:[#allocation7 + $0x18] sm:$0xf]
        %v324 = vld [vmem:[#allocation7 + $0x1c] sm:$0xf]
        %v325 = vld [vmem:[#allocation7 + $0x20] sm:$0xf]
        %v326 = vld [vmem:[#allocation7 + $0x24] sm:$0xf]
        %v327 = vld [vmem:[#allocation7 + $0x28] sm:$0xf]
        %v328 = vld [vmem:[#allocation7 + $0x2c] sm:$0xf]
        %v329 = vld [vmem:[#allocation7 + $0x30] sm:$0xf]
        %v330 = vld [vmem:[#allocation7 + $0x34] sm:$0xf]
        %v331 = vld [vmem:[#allocation7 + $0x38] sm:$0xf]
        %v332 = vld [vmem:[#allocation7 + $0x3c] sm:$0xf]
        %v333 = vld [vmem:[%s4] sm:$0x1]
        %v335 = vperm.slane %v333, 0
        %v353 = vunpack.c.l.b16 %v317
        %v354 = vunpack.c.l.b16 %v318
        %v355 = vunpack.c.l.b16 %v319
        %v356 = vunpack.c.l.b16 %v320
        %v357 = vunpack.c.l.b16 %v321
        %v358 = vunpack.c.l.b16 %v322
        %v359 = vunpack.c.l.b16 %v323
        %v360 = vunpack.c.l.b16 %v324
        %v361 = vunpack.c.l.b16 %v325
        %v362 = vunpack.c.l.b16 %v326
        %v363 = vunpack.c.l.b16 %v327
        %v364 = vunpack.c.l.b16 %v328
        %v365 = vunpack.c.l.b16 %v329
        %v366 = vunpack.c.l.b16 %v330
        %v367 = vunpack.c.l.b16 %v331
        %v368 = vunpack.c.l.b16 %v332
        %v369 = vpack.c.b16 %v354, %v353
        %v370 = vpack.c.b16 %v356, %v355
        %v371 = vpack.c.b16 %v358, %v357
        %v372 = vpack.c.b16 %v360, %v359
        %v373 = vpack.c.b16 %v362, %v361
        %v374 = vpack.c.b16 %v364, %v363
        %v375 = vpack.c.b16 %v366, %v365
        %v376 = vpack.c.b16 %v368, %v367
        %385 = vmatpush.bf16.msra.mxu0 %v376
        %386 = vmatpush.bf16.msra.mxu0 %v375
        %387 = vmatpush.bf16.msra.mxu0 %v374
        %388 = vmatpush.bf16.msra.mxu0 %v373
        %389 = vmatpush.bf16.msra.mxu0 %v372
        %390 = vmatpush.bf16.msra.mxu0 %v371
        %391 = vmatpush.bf16.msra.mxu0 %v370
        %392 = vmatpush.bf16.msra.mxu0 %v369
        %393 = vmatmul.bf16.gmra.mxu0 %v316
        %v394 = vpop.f32.mrf.mxu0
        %v395 = vadd.f32 %v335, %v394
        %v396 = vpop.f32.mrf.mxu0
        %397 = vdwg.mxu0
        %v398 = vpack.c.bf16 %v395, %v395
        %399 = vst [vmem:[%s274] sm:$0xf] %v398
        %s400 = sand.u32 %s141, 1
        %s401 = scalar_lea.sflag [#allocation4], %s400
        %s402 = sand.u32 %s141, 1
        %s403 = smul.addr %s402, 4
        %s404 = scalar_lea.vmem [#allocation8], %s403
        // Predicated region
        $region53: #{tpu_custom_call.1} parent=39 // pred_check
          %p405 = pneg %p151
        $region54: #{tpu_custom_call.1} parent=39 // pred_check_branch
          %407 = sbr.rel (%p405) target = $region56
        $region55: #{tpu_custom_call.1} parent=39 // pred_region
          %409 = vsyncadd %s401, 0
          %s410 = smul.addr %s23, 4
          %s411 = scalar_lea.hbm %s5, %s410
          %s413 = sshll.u32 %s404, 4
          %s414 = int_to_ptr.vmem [resolvable:$true] %s413
          %s415 = sshll.u32 %s411, 4
          %s416 = int_to_ptr.hbm [resolvable:$true] %s415
          %418 = dma.vmem_to_hbm [thread:$0]  %s414, 64, %s416, %s401
        $region56: #{tpu_custom_call.1} parent=39 // pred_fallthru
          _
      $region40: #{tpu_custom_call.1} parent=5 // pred_fallthru
        _
      %p419 = scmp.le.s32.totalorder 2, %s18
      // Predicated region
      $region57: #{tpu_custom_call.1} parent=5 // pred_check
        %p420 = pneg %p419
      $region58: #{tpu_custom_call.1} parent=5 // pred_check_branch
        %422 = sbr.rel (%p420) target = $region60
      $region59: #{tpu_custom_call.1} parent=5 // pred_region
        %s423 = ssub.s32 %s18, 2
        // Predicated region
        $region61: #{tpu_custom_call.1} parent=59 // pred_check
          %p424 = pneg %p157
        $region62: #{tpu_custom_call.1} parent=59 // pred_check_branch
          %426 = sbr.rel (%p424) target = $region64
        $region63: #{tpu_custom_call.1} parent=59 // pred_region
          %s427 = sand.u32 %s142, 1
          %s428 = scalar_lea.sflag [#allocation4], %s427
          %s429 = sand.u32 %s142, 1
          %s430 = smul.addr %s429, 4
          %s431 = scalar_lea.vmem [#allocation8], %s430
          %433 = dma.done %s428, 64
        $region64: #{tpu_custom_call.1} parent=59 // pred_fallthru
          _
      $region60: #{tpu_custom_call.1} parent=5 // pred_fallthru
        _
    $region6: #{tpu_custom_call.1} parent=1 // loop_footer
      %s22 = sadd.s32 1, %s18
    $region7: #{tpu_custom_call.1} parent=1 // loop_footer_branch
      %17 = sbr.rel target = $region3
    $region8: #{tpu_custom_call.1} parent=1 // loop_exit
      _
    %434 = vsyncpa [#allocation3], 1
    %s435 = scalar_lea.sflag [#allocation3], 1
    %436 = vsyncpa %s435, 1
    %437 = vsyncpa [#allocation6], 1
    %438 = vsyncpa [#allocation4], 1
    %s439 = scalar_lea.sflag [#allocation4], 1
    %440 = vsyncpa %s439, 1

</llo_original>
